<compile_context>
chip_gen: v6e
topology: v6e:2x2x1
jax: 0.10.0
libtpu: 0.0.40
codegen_flags: <defaults>
</compile_context>

<pallas_src>
import numpy as np
import jax
import jax.numpy as jnp
from jax.experimental import pallas as pl
from jax.experimental.pallas import tpu as pltpu  # noqa: F401  (TPU backend)

# ---------------- configuration ----------------
FEATURE_DIM = 16                     # D (and T, see note above)
DEPTH_DIM = 8                        # d
REDUCTION = 16
HID = FEATURE_DIM // REDUCTION       # hidden width of the channel-attention MLP
BATCH = 2
N_OBJ = 7                            # number of object tokens; CBAM sees H = N_OBJ + 1
KSIZE = 7
PAD = (KSIZE - 1) // 2


# ---------------- Pallas kernel ----------------
def _cbam_fused_kernel(x_ref, fdep_ref, w1t_ref, b1_ref, w2t_ref, b2_ref,
                       kconv_ref, convb_ref, wfc_ref, fcb_ref, out_ref):
    B, C, HW = x_ref.shape
    x = x_ref[...]                                     # (B, C, HW) f32, lane-dense

    # ---- Channel attention: global avg / max pool over the flattened plane ----
    avg = jnp.mean(x, axis=-1)                         # (B, C)
    mx = jnp.max(x, axis=-1)                           # (B, C)
    p = jnp.concatenate([avg, mx], axis=0)             # (2B, C): share one MLP pass
    h = jnp.dot(p, w1t_ref[...], preferred_element_type=jnp.float32) + b1_ref[...]
    h = jnp.maximum(h, 0.0)                            # (2B, HIDp)  (padded hidden)
    o = jnp.dot(h, w2t_ref[...], preferred_element_type=jnp.float32) + b2_ref[...]
    ca = jax.nn.sigmoid(o[:B] + o[B:])                 # (B, C)
    x_ca = x * ca[:, :, None]                          # (B, C, HW)

    # ---- Spatial attention: channel mean/max -> 7x7 conv as ONE matmul ----
    s_avg = jnp.mean(x_ca, axis=1)                     # (B, HW)
    s_max = jnp.max(x_ca, axis=1)                      # (B, HW)
    s2 = jnp.concatenate([s_avg, s_max], axis=-1)      # (B, 2*HW)
    conv = jnp.dot(s2, kconv_ref[...], preferred_element_type=jnp.float32)
    sa = jax.nn.sigmoid(conv + convb_ref[...])         # (B, HW)
    y = x_ca * sa[:, None, :]                          # (B, C, HW)

    # ---- drop frame channel (T axis), fuse depth, fc via block-diag matmul ----
    y_obj = y[:, :C - 1, :].reshape(B * (C - 1), HW)   # (B*(C-1), H*W)
    fdep = fdep_ref[...]                               # (B*(C-1), H*d)
    act = jnp.concatenate([y_obj, fdep], axis=-1)      # (B*(C-1), H*(W+d))
    out = jnp.dot(act, wfc_ref[...], preferred_element_type=jnp.float32)
    out_ref[...] = out + fcb_ref[...]                  # (B*(C-1), H*W) lane-dense


# ---------------- wrapper ----------------
def cbam_spatial_attention(f_obj, f_frame, f_depth, params):
    # Glue: concat object + frame tokens along the N axis (dim=2) -> NCHW-like,
    # then flatten the spatial plane so the kernel sees a 128-lane-dense layout.
    combined = jnp.concatenate([f_obj, f_frame], axis=2)      # (B, C=T, H=N+1, W=D)
    B, C, H, W = combined.shape
    d = f_depth.shape[-1]
    D = W
    HW = H * W                                                # 8 * 16 = 128

    xf = combined.reshape(B, C, HW).astype(jnp.float32)
    fdf = f_depth.reshape(B * (C - 1), H * d).astype(jnp.float32)

    w1 = params["w1"].astype(jnp.float32)
    b1 = params["b1"].astype(jnp.float32)
    w2 = params["w2"].astype(jnp.float32)
    b2 = params["b2"].astype(jnp.float32)
    conv_w = params["conv_w"].astype(jnp.float32)
    conv_b = params["conv_b"].astype(jnp.float32)
    fc_w = params["fc_w"].astype(jnp.float32)
    fc_b = params["fc_b"].astype(jnp.float32)

    # Channel-attention MLP weights, transposed and hidden-dim padded to a
    # sublane-friendly multiple of 8 (zero rows/cols keep the math exact).
    hid = w1.shape[0]
    hidp = ((hid + 7) // 8) * 8
    w1t = jnp.zeros((C, hidp), jnp.float32).at[:, :hid].set(w1.T)
    b1p = jnp.zeros((1, hidp), jnp.float32).at[:, :hid].set(b1.reshape(1, hid))
    w2t = jnp.zeros((hidp, C), jnp.float32).at[:hid, :].set(w2.T)
    b2r = b2.reshape(1, C)

    # 7x7 "same" conv over the (H, W) plane as a banded (2*HW, HW) matrix:
    #   conv[j] = sum_c sum_i s_c[i] * K_c[i, j],  K_c[i, j] = w[c, ki, kj]
    # with ki = hi - ho + PAD, kj = wi - wo + PAD when both fall in [0, KSIZE).
    idx = np.arange(HW)
    r, q = idx // W, idx % W
    dki = r[:, None] - r[None, :] + PAD
    dkj = q[:, None] - q[None, :] + PAD
    valid = (dki >= 0) & (dki < KSIZE) & (dkj >= 0) & (dkj < KSIZE)
    tap = np.where(valid, dki * KSIZE + dkj, 0).astype(np.int32)
    valid_j, tap_j = jnp.asarray(valid), jnp.asarray(tap)
    wflat = conv_w.reshape(2, KSIZE * KSIZE)                  # (2, 49): [avg, max]
    kconv = jnp.concatenate(
        [jnp.where(valid_j, wflat[c][tap_j], 0.0) for c in range(2)], axis=0)
    convb_vec = jnp.broadcast_to(conv_b.reshape(1, 1), (1, HW))

    # fc(concat([y, depth], -1)) as ONE block-diagonal matmul whose output row
    # packs all H tokens of one (b, t) slice -> lane-dense (.., H*D) output.
    wf_t = fc_w[:, :D].T                                      # (D, D)
    wd_t = fc_w[:, D:].T                                      # (d, D)
    eye_h = jnp.eye(H, dtype=jnp.float32)
    wfc = jnp.concatenate(
        [jnp.kron(eye_h, wf_t), jnp.kron(eye_h, wd_t)], axis=0)   # (H*(D+d), H*D)
    fcb_vec = jnp.tile(fc_b.reshape(1, D), (1, H))            # (1, H*D)

    out_flat = pl.pallas_call(
        _cbam_fused_kernel,
        out_shape=jax.ShapeDtypeStruct((B * (C - 1), HW), jnp.float32),
        # No grid: single invocation, all operands resident in VMEM
        # (total footprint ~0.3 MiB, far below limits on v5e/v6e/v7x).
    )(xf, fdf, w1t, b1p, w2t, b2r, kconv, convb_vec, wfc, fcb_vec)

    return out_flat.reshape(B, C - 1, H, D)


# ---------------- plain-JAX reference (for verification) ----------------
def reference_forward(f_obj, f_frame, f_depth, params):
    x = jnp.concatenate([f_obj, f_frame], axis=2)             # (B, T, N+1, D)
    # ChannelAttention
    avg = jnp.mean(x, axis=(2, 3))                            # (B, T)
    mx = jnp.max(x, axis=(2, 3))                              # (B, T)

    def mlp(v):
        h = jnp.maximum(v @ params["w1"].T + params["b1"], 0.0)
        return h @ params["w2"].T + params["b2"]

    ca = jax.nn.sigmoid(mlp(avg) + mlp(mx))[:, :, None, None]
    x = x * ca
    # SpatialAttention
    s = jnp.stack([jnp.mean(x, axis=1), jnp.max(x, axis=1)], axis=1)   # (B, 2, H, W)
    conv = jax.lax.conv_general_dilated(
        s, params["conv_w"], window_strides=(1, 1),
        padding=[(PAD, PAD), (PAD, PAD)],
        dimension_numbers=("NCHW", "OIHW", "NCHW"))
    sa = jax.nn.sigmoid(conv + params["conv_b"].reshape(1, 1, 1, 1))
    x = x * sa
    obj = x[:, :-1, :]                                        # slice along T axis
    fused = jnp.concatenate([obj, f_depth], axis=-1)
    return fused @ params["fc_w"].T + params["fc_b"]


if __name__ == "__main__":
    B, T, N, D, d = BATCH, FEATURE_DIM, N_OBJ, FEATURE_DIM, DEPTH_DIM

    key = jax.random.PRNGKey(0)
    ks = jax.random.split(key, 12)

    # inputs (T == FEATURE_DIM required by the original module; see NOTE above)
    f_obj = jax.random.normal(ks[0], (B, T, N, D), jnp.float32)
    f_frame = jax.random.normal(ks[1], (B, T, 1, D), jnp.float32)
    f_depth = jax.random.normal(ks[2], (B, T - 1, N + 1, d), jnp.float32)

    # deterministic parameter init (shapes mirror the PyTorch module)
    params = {
        "w1": 0.30 * jax.random.normal(ks[3], (HID, T), jnp.float32),           # Linear(D, D//16)
        "b1": 0.10 * jax.random.normal(ks[4], (HID,), jnp.float32),
        "w2": 0.30 * jax.random.normal(ks[5], (T, HID), jnp.float32),            # Linear(D//16, D)
        "b2": 0.10 * jax.random.normal(ks[6], (T,), jnp.float32),
        "conv_w": 0.10 * jax.random.normal(ks[7], (1, 2, KSIZE, KSIZE), jnp.float32),  # Conv2d(2,1,7)
        "conv_b": 0.10 * jax.random.normal(ks[8], (1,), jnp.float32),
        "fc_w": 0.20 * jax.random.normal(ks[9], (D, D + d), jnp.float32),        # Linear(D+d, D)
        "fc_b": 0.10 * jax.random.normal(ks[10], (D,), jnp.float32),
    }

    out = cbam_spatial_attention(f_obj, f_frame, f_depth, params)
    out = jax.block_until_ready(out)

    ref = reference_forward(f_obj, f_frame, f_depth, params)
    assert out.shape == (B, T - 1, N + 1, D), out.shape
    if not jnp.allclose(out, ref, atol=2e-2, rtol=2e-2):
        max_err = float(jnp.max(jnp.abs(out - ref)))
        raise AssertionError(f"kernel mismatch vs reference, max abs err = {max_err}")

    print("KERNEL_OK")
</pallas_src>

<mosaic_0001>
module attributes {stable_mosaic.version = 11 : i64} {
  func.func @_cbam_fused_kernel(%arg0: memref<2x16x128xf32, #tpu.memory_space<vmem>>, %arg1: memref<30x64xf32, #tpu.memory_space<vmem>>, %arg2: memref<16x8xf32, #tpu.memory_space<vmem>>, %arg3: memref<1x8xf32, #tpu.memory_space<vmem>>, %arg4: memref<8x16xf32, #tpu.memory_space<vmem>>, %arg5: memref<1x16xf32, #tpu.memory_space<vmem>>, %arg6: memref<256x128xf32, #tpu.memory_space<vmem>>, %arg7: memref<1x128xf32, #tpu.memory_space<vmem>>, %arg8: memref<192x128xf32, #tpu.memory_space<vmem>>, %arg9: memref<1x128xf32, #tpu.memory_space<vmem>>, %arg10: memref<30x128xf32, #tpu.memory_space<vmem>>) attributes {dimension_semantics = [], scalar_prefetch = 0 : i64, scratch_operands = 0 : i64, tpu.core_type = #tpu.core_type<tc>} {
    %c0 = arith.constant 0 : index
    %c0_0 = arith.constant 0 : index
    %c0_1 = arith.constant 0 : index
    %0 = vector.load %arg0[%c0, %c0_0, %c0_1] : memref<2x16x128xf32, #tpu.memory_space<vmem>>, vector<2x16x128xf32>
    %cst = arith.constant dense<0.000000e+00> : vector<2x16xf32>
    %1 = vector.multi_reduction <add>, %0, %cst [2] : vector<2x16x128xf32> to vector<2x16xf32>
    %cst_2 = arith.constant 1.280000e+02 : f32
    %2 = vector.broadcast %cst_2 : f32 to vector<2x16xf32>
    %3 = arith.divf %1, %2 : vector<2x16xf32>
    %cst_3 = arith.constant dense<0xFF800000> : vector<2x16xf32>
    %4 = vector.multi_reduction <maximumf>, %0, %cst_3 [2] : vector<2x16x128xf32> to vector<2x16xf32>
    %5 = tpu.concatenate %3, %4 in 0 : vector<2x16xf32>, vector<2x16xf32> -> vector<4x16xf32>
    %c0_4 = arith.constant 0 : index
    %c0_5 = arith.constant 0 : index
    %6 = vector.load %arg2[%c0_4, %c0_5] : memref<16x8xf32, #tpu.memory_space<vmem>>, vector<16x8xf32>
    %cst_6 = arith.constant dense<0.000000e+00> : vector<4x8xf32>
    %7 = tpu.matmul %5, %6, %cst_6 {dimension_numbers = #tpu.dot_dimension_numbers<[1], [0], [0], [1], [0, 0, 1, 1], [], []>} : vector<4x16xf32>, vector<16x8xf32>, vector<4x8xf32> -> vector<4x8xf32>
    %c0_7 = arith.constant 0 : index
    %c0_8 = arith.constant 0 : index
    %8 = vector.load %arg3[%c0_7, %c0_8] : memref<1x8xf32, #tpu.memory_space<vmem>>, vector<1x8xf32>
    %9 = vector.broadcast %8 : vector<1x8xf32> to vector<4x8xf32>
    %10 = arith.addf %7, %9 : vector<4x8xf32>
    %cst_9 = arith.constant 0.000000e+00 : f32
    %11 = vector.broadcast %cst_9 : f32 to vector<4x8xf32>
    %12 = arith.maximumf %10, %11 : vector<4x8xf32>
    %c0_10 = arith.constant 0 : index
    %c0_11 = arith.constant 0 : index
    %13 = vector.load %arg4[%c0_10, %c0_11] : memref<8x16xf32, #tpu.memory_space<vmem>>, vector<8x16xf32>
    %cst_12 = arith.constant dense<0.000000e+00> : vector<4x16xf32>
    %14 = tpu.matmul %12, %13, %cst_12 {dimension_numbers = #tpu.dot_dimension_numbers<[1], [0], [0], [1], [0, 0, 1, 1], [], []>} : vector<4x8xf32>, vector<8x16xf32>, vector<4x16xf32> -> vector<4x16xf32>
    %c0_13 = arith.constant 0 : index
    %c0_14 = arith.constant 0 : index
    %15 = vector.load %arg5[%c0_13, %c0_14] : memref<1x16xf32, #tpu.memory_space<vmem>>, vector<1x16xf32>
    %16 = vector.broadcast %15 : vector<1x16xf32> to vector<4x16xf32>
    %17 = arith.addf %14, %16 : vector<4x16xf32>
    %18 = vector.extract_strided_slice %17 {offsets = [0, 0], sizes = [2, 16], strides = [1, 1]} : vector<4x16xf32> to vector<2x16xf32>
    %19 = vector.extract_strided_slice %17 {offsets = [2, 0], sizes = [2, 16], strides = [1, 1]} : vector<4x16xf32> to vector<2x16xf32>
    %20 = arith.addf %18, %19 : vector<2x16xf32>
    %21 = arith.negf %20 : vector<2x16xf32>
    %22 = math.exp %21 : vector<2x16xf32>
    %cst_15 = arith.constant 1.000000e+00 : f32
    %23 = vector.broadcast %cst_15 : f32 to vector<2x16xf32>
    %24 = arith.addf %23, %22 : vector<2x16xf32>
    %25 = arith.divf %23, %24 : vector<2x16xf32>
    %26 = vector.shape_cast %25 : vector<2x16xf32> to vector<2x16x1xf32>
    %27 = vector.broadcast %26 : vector<2x16x1xf32> to vector<2x16x128xf32>
    %28 = arith.mulf %0, %27 : vector<2x16x128xf32>
    %cst_16 = arith.constant dense<0.000000e+00> : vector<2x128xf32>
    %29 = vector.multi_reduction <add>, %28, %cst_16 [1] : vector<2x16x128xf32> to vector<2x128xf32>
    %cst_17 = arith.constant 1.600000e+01 : f32
    %30 = vector.broadcast %cst_17 : f32 to vector<2x128xf32>
    %31 = arith.divf %29, %30 : vector<2x128xf32>
    %cst_18 = arith.constant dense<0xFF800000> : vector<2x128xf32>
    %32 = vector.multi_reduction <maximumf>, %28, %cst_18 [1] : vector<2x16x128xf32> to vector<2x128xf32>
    %33 = tpu.concatenate %31, %32 in 1 : vector<2x128xf32>, vector<2x128xf32> -> vector<2x256xf32>
    %c0_19 = arith.constant 0 : index
    %c0_20 = arith.constant 0 : index
    %34 = vector.load %arg6[%c0_19, %c0_20] : memref<256x128xf32, #tpu.memory_space<vmem>>, vector<256x128xf32>
    %cst_21 = arith.constant dense<0.000000e+00> : vector<2x128xf32>
    %35 = tpu.matmul %33, %34, %cst_21 {dimension_numbers = #tpu.dot_dimension_numbers<[1], [0], [0], [1], [0, 0, 1, 1], [], []>} : vector<2x256xf32>, vector<256x128xf32>, vector<2x128xf32> -> vector<2x128xf32>
    %c0_22 = arith.constant 0 : index
    %c0_23 = arith.constant 0 : index
    %36 = vector.load %arg7[%c0_22, %c0_23] : memref<1x128xf32, #tpu.memory_space<vmem>>, vector<1x128xf32>
    %37 = vector.broadcast %36 : vector<1x128xf32> to vector<2x128xf32>
    %38 = arith.addf %35, %37 : vector<2x128xf32>
    %39 = arith.negf %38 : vector<2x128xf32>
    %40 = math.exp %39 : vector<2x128xf32>
    %cst_24 = arith.constant 1.000000e+00 : f32
    %41 = vector.broadcast %cst_24 : f32 to vector<2x128xf32>
    %42 = arith.addf %41, %40 : vector<2x128xf32>
    %43 = arith.divf %41, %42 : vector<2x128xf32>
    %44 = vector.shape_cast %43 : vector<2x128xf32> to vector<2x1x128xf32>
    %45 = vector.broadcast %44 : vector<2x1x128xf32> to vector<2x16x128xf32>
    %46 = arith.mulf %28, %45 : vector<2x16x128xf32>
    %47 = vector.extract_strided_slice %46 {offsets = [0, 0, 0], sizes = [2, 15, 128], strides = [1, 1, 1]} : vector<2x16x128xf32> to vector<2x15x128xf32>
    %48 = vector.shape_cast %47 : vector<2x15x128xf32> to vector<30x128xf32>
    %c0_25 = arith.constant 0 : index
    %c0_26 = arith.constant 0 : index
    %49 = vector.load %arg1[%c0_25, %c0_26] : memref<30x64xf32, #tpu.memory_space<vmem>>, vector<30x64xf32>
    %50 = tpu.concatenate %48, %49 in 1 : vector<30x128xf32>, vector<30x64xf32> -> vector<30x192xf32>
    %c0_27 = arith.constant 0 : index
    %c0_28 = arith.constant 0 : index
    %51 = vector.load %arg8[%c0_27, %c0_28] : memref<192x128xf32, #tpu.memory_space<vmem>>, vector<192x128xf32>
    %cst_29 = arith.constant dense<0.000000e+00> : vector<30x128xf32>
    %52 = tpu.matmul %50, %51, %cst_29 {dimension_numbers = #tpu.dot_dimension_numbers<[1], [0], [0], [1], [0, 0, 1, 1], [], []>} : vector<30x192xf32>, vector<192x128xf32>, vector<30x128xf32> -> vector<30x128xf32>
    %c0_30 = arith.constant 0 : index
    %c0_31 = arith.constant 0 : index
    %53 = vector.load %arg9[%c0_30, %c0_31] : memref<1x128xf32, #tpu.memory_space<vmem>>, vector<1x128xf32>
    %54 = vector.broadcast %53 : vector<1x128xf32> to vector<30x128xf32>
    %55 = arith.addf %52, %54 : vector<30x128xf32>
    %c0_32 = arith.constant 0 : index
    %c0_33 = arith.constant 0 : index
    %56 = vector.load %arg10[%c0_32, %c0_33] : memref<30x128xf32, #tpu.memory_space<vmem>>, vector<30x128xf32>
    tpu.vector_store %arg10[%c0_32, %c0_33], %55 {strides = array<i32>} : memref<30x128xf32, #tpu.memory_space<vmem>>, vector<30x128xf32>,
    return
  }
}

</mosaic_0001>

<llo_original>
// kernel: tpu_custom_call.1
$region0: #{tpu_custom_call.1}
  #allocation0 [shape = 'u32[]', space=smem, size = 0x4, offset = 0x4, fixed_abs, tag = 'smem constant byte address 0x4 - core index']
  #allocation1 [shape = 'u32[144,128]{1,0:T(1,128)}', space=vmem, size = 0x12000, scoped, tag = 'internal scratch']
  %s0 = inlined_call_operand.hbm [shape: f32[2,16,128], index: 0, kind: input, shape index: {}]
  %s1 = inlined_call_operand.hbm [shape: f32[30,64], index: 1, kind: input, shape index: {}]
  %s2 = inlined_call_operand.vmem [shape: f32[16,8], index: 2, kind: input, shape index: {}]
  %s3 = inlined_call_operand.vmem [shape: f32[1,8], index: 3, kind: input, shape index: {}]
  %s4 = inlined_call_operand.vmem [shape: f32[8,16], index: 4, kind: input, shape index: {}]
  %s5 = inlined_call_operand.vmem [shape: f32[1,16], index: 5, kind: input, shape index: {}]
  %s6 = inlined_call_operand.hbm [shape: f32[256,128], index: 6, kind: input, shape index: {}]
  %s7 = inlined_call_operand.vmem [shape: f32[1,128], index: 7, kind: input, shape index: {}]
  %s8 = inlined_call_operand.hbm [shape: f32[192,128], index: 8, kind: input, shape index: {}]
  %s9 = inlined_call_operand.vmem [shape: f32[1,128], index: 9, kind: input, shape index: {}]
  %s10 = inlined_call_operand.hbm [shape: f32[30,128], index: 10, kind: output, shape index: {}]
  %s11 = sld [smem:[#allocation0]]
  $region66: #{tpu_custom_call.1} parent=0
    _
  %s13 = ssub.s32 1, %s11
  %s14 = scalar_select 0, %s13, %s11
  $region1: #{tpu_custom_call.1} parent=0
    #allocation2 [shape = 'u8[16384]{0}', space=vmem, size = 0x4000, scoped, tag = 'input window, operand 0, single buffered']
    #allocation3 [shape = 's32[1]{0}', space=sflag, size = 0x4, scoped, tag = 'scoped memory for tpu_custom_call.1']
    #allocation4 [shape = 's32[1]{0}', space=sflag, size = 0x4, scoped, tag = 'scoped memory for tpu_custom_call.1']
    #allocation5 [shape = 'u8[16384]{0}', space=vmem, size = 0x4000, scoped, tag = 'input window, operand 1, single buffered']
    #allocation6 [shape = 's32[1]{0}', space=sflag, size = 0x4, scoped, tag = 'scoped memory for tpu_custom_call.1']
    #allocation7 [shape = 'u8[131072]{0}', space=vmem, size = 0x20000, scoped, tag = 'input window, operand 6, single buffered']
    #allocation8 [shape = 'u8[98304]{0}', space=vmem, size = 0x18000, scoped, tag = 'input window, operand 8, single buffered']
    #allocation9 [shape = 's32[1]{0}', space=sflag, size = 0x4, scoped, tag = 'scoped memory for tpu_custom_call.1']
    #allocation10 [shape = 'u8[16384]{0}', space=vmem, size = 0x4000, scoped, tag = 'output window, operand 0, single buffered']
    %15 = vsyncpa [#allocation3], 0
    %16 = vsyncpa [#allocation6], 0
    %17 = vsyncpa [#allocation9], 0
    %18 = vsyncpa [#allocation4], 0
    // Predicated region
    $region2: #{tpu_custom_call.1} parent=1 // pred_check
      _
    $region3: #{tpu_custom_call.1} parent=1 // pred_check_branch
      %20 = sbr.rel (0) target = $region5
    $region4: #{tpu_custom_call.1} parent=1 // pred_region
      %s22 = ssub.s32 512, 512
      %23 = vsyncadd [#allocation3], %s22
      %s24 = sshll.u32 [#allocation2], 4
      %s25 = int_to_ptr.vmem [resolvable:$true] %s24
      %30 = dma.hbm_to_vmem [thread:$0]  %s0, 512, %s25, [#allocation3], 128, 128, 8
    $region5: #{tpu_custom_call.1} parent=1 // pred_fallthru
      _
    // Predicated region
    $region6: #{tpu_custom_call.1} parent=1 // pred_check
      _
    $region7: #{tpu_custom_call.1} parent=1 // pred_check_branch
      %32 = sbr.rel (0) target = $region9
    $region8: #{tpu_custom_call.1} parent=1 // pred_region
      %s34 = ssub.s32 512, 512
      %35 = vsyncadd [#allocation6], %s34
      %s36 = sshll.u32 [#allocation5], 4
      %s37 = int_to_ptr.vmem [resolvable:$true] %s36
      %42 = dma.hbm_to_vmem [thread:$0]  %s1, 512, %s37, [#allocation6], 128, 128, 8
    $region9: #{tpu_custom_call.1} parent=1 // pred_fallthru
      _
    // Predicated region
    $region10: #{tpu_custom_call.1} parent=1 // pred_check
      _
    $region11: #{tpu_custom_call.1} parent=1 // pred_check_branch
      %44 = sbr.rel (0) target = $region13
    $region12: #{tpu_custom_call.1} parent=1 // pred_region
      _
    $region13: #{tpu_custom_call.1} parent=1 // pred_fallthru
      _
    // Predicated region
    $region14: #{tpu_custom_call.1} parent=1 // pred_check
      _
    $region15: #{tpu_custom_call.1} parent=1 // pred_check_branch
      %46 = sbr.rel (0) target = $region17
    $region16: #{tpu_custom_call.1} parent=1 // pred_region
      _
    $region17: #{tpu_custom_call.1} parent=1 // pred_fallthru
      _
    // Predicated region
    $region18: #{tpu_custom_call.1} parent=1 // pred_check
      _
    $region19: #{tpu_custom_call.1} parent=1 // pred_check_branch
      %48 = sbr.rel (0) target = $region21
    $region20: #{tpu_custom_call.1} parent=1 // pred_region
      _
    $region21: #{tpu_custom_call.1} parent=1 // pred_fallthru
      _
    // Predicated region
    $region22: #{tpu_custom_call.1} parent=1 // pred_check
      _
    $region23: #{tpu_custom_call.1} parent=1 // pred_check_branch
      %50 = sbr.rel (0) target = $region25
    $region24: #{tpu_custom_call.1} parent=1 // pred_region
      _
    $region25: #{tpu_custom_call.1} parent=1 // pred_fallthru
      _
    // Predicated region
    $region26: #{tpu_custom_call.1} parent=1 // pred_check
      _
    $region27: #{tpu_custom_call.1} parent=1 // pred_check_branch
      %52 = sbr.rel (0) target = $region29
    $region28: #{tpu_custom_call.1} parent=1 // pred_region
      %s54 = ssub.s32 4096, 4096
      %55 = vsyncadd [#allocation6], %s54
      %s56 = sshll.u32 [#allocation7], 4
      %s57 = int_to_ptr.vmem [resolvable:$true] %s56
      %62 = dma.hbm_to_vmem [thread:$0]  %s6, 4096, %s57, [#allocation6], 128, 128, 8
    $region29: #{tpu_custom_call.1} parent=1 // pred_fallthru
      _
    // Predicated region
    $region30: #{tpu_custom_call.1} parent=1 // pred_check
      _
    $region31: #{tpu_custom_call.1} parent=1 // pred_check_branch
      %64 = sbr.rel (0) target = $region33
    $region32: #{tpu_custom_call.1} parent=1 // pred_region
      _
    $region33: #{tpu_custom_call.1} parent=1 // pred_fallthru
      _
    // Predicated region
    $region34: #{tpu_custom_call.1} parent=1 // pred_check
      _
    $region35: #{tpu_custom_call.1} parent=1 // pred_check_branch
      %66 = sbr.rel (0) target = $region37
    $region36: #{tpu_custom_call.1} parent=1 // pred_region
      %s68 = ssub.s32 3072, 3072
      %69 = vsyncadd [#allocation9], %s68
      %s70 = sshll.u32 [#allocation8], 4
      %s71 = int_to_ptr.vmem [resolvable:$true] %s70
      %76 = dma.hbm_to_vmem [thread:$0]  %s8, 3072, %s71, [#allocation9], 128, 128, 8
    $region37: #{tpu_custom_call.1} parent=1 // pred_fallthru
      _
    // Predicated region
    $region38: #{tpu_custom_call.1} parent=1 // pred_check
      _
    $region39: #{tpu_custom_call.1} parent=1 // pred_check_branch
      %78 = sbr.rel (0) target = $region41
    $region40: #{tpu_custom_call.1} parent=1 // pred_region
      _
    $region41: #{tpu_custom_call.1} parent=1 // pred_fallthru
      _
    // Predicated region
    $region42: #{tpu_custom_call.1} parent=1 // pred_check
      _
    $region43: #{tpu_custom_call.1} parent=1 // pred_check_branch
      %80 = sbr.rel (0) target = $region45
    $region44: #{tpu_custom_call.1} parent=1 // pred_region
      %81 = dma.done [#allocation3], 512
    $region45: #{tpu_custom_call.1} parent=1 // pred_fallthru
      _
    // Predicated region
    $region46: #{tpu_custom_call.1} parent=1 // pred_check
      _
    $region47: #{tpu_custom_call.1} parent=1 // pred_check_branch
      %83 = sbr.rel (0) target = $region49
    $region48: #{tpu_custom_call.1} parent=1 // pred_region
      %84 = dma.done [#allocation6], 512
    $region49: #{tpu_custom_call.1} parent=1 // pred_fallthru
      _
    // Predicated region
    $region50: #{tpu_custom_call.1} parent=1 // pred_check
      _
    $region51: #{tpu_custom_call.1} parent=1 // pred_check_branch
      %86 = sbr.rel (0) target = $region53
    $region52: #{tpu_custom_call.1} parent=1 // pred_region
      %87 = dma.done [#allocation6], 4096
    $region53: #{tpu_custom_call.1} parent=1 // pred_fallthru
      _
    // Predicated region
    $region54: #{tpu_custom_call.1} parent=1 // pred_check
      _
    $region55: #{tpu_custom_call.1} parent=1 // pred_check_branch
      %89 = sbr.rel (0) target = $region57
    $region56: #{tpu_custom_call.1} parent=1 // pred_region
      %90 = dma.done [#allocation9], 3072
    $region57: #{tpu_custom_call.1} parent=1 // pred_fallthru
      _
    %v91 = vld [vmem:[#allocation2] sm:$0xff]
    %v92 = vld [vmem:[#allocation2 + $0x8] sm:$0xff]
    %v93 = vld [vmem:[#allocation2 + $0x10] sm:$0xff]
    %v94 = vld [vmem:[#allocation2 + $0x18] sm:$0xff]
    %95 = vadd.xlane.f32.xlu0 %v91
    %v96 = vpop.xlane.xlu0 %95
    %97 = vadd.xlane.f32.xlu0 %v92
    %v98 = vpop.xlane.xlu0 %97
    %99 = vadd.xlane.f32.xlu0 %v93
    %v100 = vpop.xlane.xlu0 %99
    %101 = vadd.xlane.f32.xlu0 %v94
    %v102 = vpop.xlane.xlu0 %101
    %v103 = vrcp.pop 128.0
    %v104 = vmul.f32 %v96, %v103
    %v105 = vmul.f32 %v98, %v103
    %v106 = vmul.f32 %v100, %v103
    %v107 = vmul.f32 %v102, %v103
    %108 = vmax.xlane.f32.xlu0 %v91
    %v109 = vpop.xlane.xlu0 %108
    %110 = vmax.xlane.f32.xlu0 %v92
    %v111 = vpop.xlane.xlu0 %110
    %112 = vmax.xlane.f32.xlu0 %v93
    %v113 = vpop.xlane.xlu0 %112
    %114 = vmax.xlane.f32.xlu0 %v94
    %v115 = vpop.xlane.xlu0 %114
    %v120 = vlaneseq
    %v121 = vand.u32 %v120, 127
    %v122 = vlaneseq
    %v123 = vshrl.u32 %v122, 7
    %v124 = vsub.s32 %v121, %v123
    %v125 = vrot.slane %v104, %v124
    %v126 = vadd.s32 %v121, 4294967288
    %v127 = vlaneseq
    %v128 = vshrl.u32 %v127, 7
    %v129 = vsub.s32 %v126, %v128
    %v130 = vrot.slane %v105, %v129
    %vm131 = vcmask 130112
    %v132 = vsel %vm131, %v130, %v125
    %v133 = vlaneseq
    %v134 = vshrl.u32 %v133, 7
    %v135 = vsub.s32 %v121, %v134
    %v136 = vrot.slane %v106, %v135
    %v137 = vlaneseq
    %v138 = vshrl.u32 %v137, 7
    %v139 = vsub.s32 %v126, %v138
    %v140 = vrot.slane %v107, %v139
    %v141 = vsel %vm131, %v140, %v136
    %vm142 = vcmask 1041409
    %v143 = vsel %vm142, %v141, %v132
    %v149 = vlaneseq
    %v150 = vshrl.u32 %v149, 7
    %v151 = vsub.s32 %v121, %v150
    %v152 = vrot.slane %v109, %v151
    %v153 = vlaneseq
    %v154 = vshrl.u32 %v153, 7
    %v155 = vsub.s32 %v126, %v154
    %v156 = vrot.slane %v111, %v155
    %v157 = vsel %vm131, %v156, %v152
    %v158 = vlaneseq
    %v159 = vshrl.u32 %v158, 7
    %v160 = vsub.s32 %v121, %v159
    %v161 = vrot.slane %v113, %v160
    %v162 = vlaneseq
    %v163 = vshrl.u32 %v162, 7
    %v164 = vsub.s32 %v126, %v163
    %v165 = vrot.slane %v115, %v164
    %v166 = vsel %vm131, %v165, %v161
    %vm167 = vcmask 1043459
    %v168 = vsel %vm167, %v166, %v157
    %vm170 = vcmask 1041408
    %v171 = vsel %vm170, %v143, %v168
    %v172 = vld [vmem:[%s2] sm:$0xff]
    %v173 = vld [vmem:[%s2 + $0x8] sm:$0xff]
    %v174 = vld [vmem:[%s3] sm:$0x1]
    %v176 = vlaneseq
    %v177 = vshrl.u32 %v176, 7
    %v178 = vsub.s32 0, %v177
    %v179 = vrot.slane %v174, %v178
    %vm181 = vcmask 130048
    %v183 = vsel %vm181, %v171, 0
    %185 = vmatprep.subr.mxu0 0.0
    %186 = vmatpush1.msra.mxu0 0.0
    %187 = vmatprep.subr.mxu0 0.0
    %188 = vmatpush1.msra.mxu0 0.0
    %189 = vmatprep.subr.mxu0 0.0
    %190 = vmatpush1.msra.mxu0 0.0
    %191 = vmatprep.subr.mxu0 0.0
    %192 = vmatpush1.msra.mxu0 0.0
    %193 = vmatprep.subr.mxu0 0.0
    %194 = vmatpush1.msra.mxu0 0.0
    %195 = vmatprep.subr.mxu0 0.0
    %196 = vmatpush1.msra.mxu0 0.0
    %197 = vmatprep.subr.mxu0 0.0
    %198 = vmatpush1.msra.mxu0 0.0
    %199 = vmatprep.subr.mxu0 0.0
    %200 = vmatpush1.msra.mxu0 0.0
    %201 = vmatprep.subr.mxu0 0.0
    %202 = vmatpush1.msra.mxu0 0.0
    %203 = vmatprep.subr.mxu0 0.0
    %204 = vmatpush1.msra.mxu0 0.0
    %205 = vmatprep.subr.mxu0 0.0
    %206 = vmatpush1.msra.mxu0 0.0
    %207 = vmatprep.subr.mxu0 0.0
    %208 = vmatpush1.msra.mxu0 0.0
    %209 = vmatprep.subr.mxu0 0.0
    %210 = vmatpush1.msra.mxu0 0.0
    %211 = vmatprep.subr.mxu0 0.0
    %212 = vmatpush1.msra.mxu0 0.0
    %213 = vmatprep.subr.mxu0 0.0
    %214 = vmatpush1.msra.mxu0 %v173
    %215 = vmatprep.subr.mxu0 0.0
    %216 = vmatpush1.msra.mxu0 %v172
    %217 = vmatprep.subr.mxu0 0.0
    %218 = vmatpush2.msra.mxu0 0.0
    %219 = vmatprep.subr.mxu0 0.0
    %220 = vmatpush2.msra.mxu0 0.0
    %221 = vmatprep.subr.mxu0 0.0
    %222 = vmatpush2.msra.mxu0 0.0
    %223 = vmatprep.subr.mxu0 0.0
    %224 = vmatpush2.msra.mxu0 0.0
    %225 = vmatprep.subr.mxu0 0.0
    %226 = vmatpush2.msra.mxu0 0.0
    %227 = vmatprep.subr.mxu0 0.0
    %228 = vmatpush2.msra.mxu0 0.0
    %229 = vmatprep.subr.mxu0 0.0
    %230 = vmatpush2.msra.mxu0 0.0
    %231 = vmatprep.subr.mxu0 0.0
    %232 = vmatpush2.msra.mxu0 0.0
    %233 = vmatprep.subr.mxu0 0.0
    %234 = vmatpush2.msra.mxu0 0.0
    %235 = vmatprep.subr.mxu0 0.0
    %236 = vmatpush2.msra.mxu0 0.0
    %237 = vmatprep.subr.mxu0 0.0
    %238 = vmatpush2.msra.mxu0 0.0
    %239 = vmatprep.subr.mxu0 0.0
    %240 = vmatpush2.msra.mxu0 0.0
    %241 = vmatprep.subr.mxu0 0.0
    %242 = vmatpush2.msra.mxu0 0.0
    %243 = vmatprep.subr.mxu0 0.0
    %244 = vmatpush2.msra.mxu0 0.0
    %245 = vmatprep.subr.mxu0 0.0
    %246 = vmatpush2.msra.mxu0 0.0
    %247 = vmatprep.subr.mxu0 0.0
    %248 = vmatpush2.msra.mxu0 0.0
    %249 = vmatprep.mubr.f32.mxu0 0.0
    %250 = vmatmul.mubr.f32.gmra.mxu0 %v183
    %v251 = vpop.f32.mrf.mxu0
    %v252 = vadd.f32 %v179, %v251
    %v253 = vpop.f32.mrf.mxu0
    %254 = vdwg.mxu0
    %v255 = vmax.f32 %v252, 0.0
    %v256 = vld [vmem:[%s4] sm:$0xff]
    %v257 = vld [vmem:[%s5] sm:$0x1]
    %v259 = vlaneseq
    %v260 = vshrl.u32 %v259, 7
    %v261 = vsub.s32 0, %v260
    %v262 = vrot.slane %v257, %v261
    %vm264 = vcmask 64512
    %v266 = vsel %vm264, %v255, 0
    %268 = vmatprep.subr.mxu0 0.0
    %269 = vmatpush1.msra.mxu0 0.0
    %270 = vmatprep.subr.mxu0 0.0
    %271 = vmatpush1.msra.mxu0 0.0
    %272 = vmatprep.subr.mxu0 0.0
    %273 = vmatpush1.msra.mxu0 0.0
    %274 = vmatprep.subr.mxu0 0.0
    %275 = vmatpush1.msra.mxu0 0.0
    %276 = vmatprep.subr.mxu0 0.0
    %277 = vmatpush1.msra.mxu0 0.0
    %278 = vmatprep.subr.mxu0 0.0
    %279 = vmatpush1.msra.mxu0 0.0
    %280 = vmatprep.subr.mxu0 0.0
    %281 = vmatpush1.msra.mxu0 0.0
    %282 = vmatprep.subr.mxu0 0.0
    %283 = vmatpush1.msra.mxu0 0.0
    %284 = vmatprep.subr.mxu0 0.0
    %285 = vmatpush1.msra.mxu0 0.0
    %286 = vmatprep.subr.mxu0 0.0
    %287 = vmatpush1.msra.mxu0 0.0
    %288 = vmatprep.subr.mxu0 0.0
    %289 = vmatpush1.msra.mxu0 0.0
    %290 = vmatprep.subr.mxu0 0.0
    %291 = vmatpush1.msra.mxu0 0.0
    %292 = vmatprep.subr.mxu0 0.0
    %293 = vmatpush1.msra.mxu0 0.0
    %294 = vmatprep.subr.mxu0 0.0
    %295 = vmatpush1.msra.mxu0 0.0
    %296 = vmatprep.subr.mxu0 0.0
    %297 = vmatpush1.msra.mxu0 0.0
    %298 = vmatprep.subr.mxu0 0.0
    %299 = vmatpush1.msra.mxu0 %v256
    %300 = vmatprep.subr.mxu0 0.0
    %301 = vmatpush2.msra.mxu0 0.0
    %302 = vmatprep.subr.mxu0 0.0
    %303 = vmatpush2.msra.mxu0 0.0
    %304 = vmatprep.subr.mxu0 0.0
    %305 = vmatpush2.msra.mxu0 0.0
    %306 = vmatprep.subr.mxu0 0.0
    %307 = vmatpush2.msra.mxu0 0.0
    %308 = vmatprep.subr.mxu0 0.0
    %309 = vmatpush2.msra.mxu0 0.0
    %310 = vmatprep.subr.mxu0 0.0
    %311 = vmatpush2.msra.mxu0 0.0
    %312 = vmatprep.subr.mxu0 0.0
    %313 = vmatpush2.msra.mxu0 0.0
    %314 = vmatprep.subr.mxu0 0.0
    %315 = vmatpush2.msra.mxu0 0.0
    %316 = vmatprep.subr.mxu0 0.0
    %317 = vmatpush2.msra.mxu0 0.0
    %318 = vmatprep.subr.mxu0 0.0
    %319 = vmatpush2.msra.mxu0 0.0
    %320 = vmatprep.subr.mxu0 0.0
    %321 = vmatpush2.msra.mxu0 0.0
    %322 = vmatprep.subr.mxu0 0.0
    %323 = vmatpush2.msra.mxu0 0.0
    %324 = vmatprep.subr.mxu0 0.0
    %325 = vmatpush2.msra.mxu0 0.0
    %326 = vmatprep.subr.mxu0 0.0
    %327 = vmatpush2.msra.mxu0 0.0
    %328 = vmatprep.subr.mxu0 0.0
    %329 = vmatpush2.msra.mxu0 0.0
    %330 = vmatprep.subr.mxu0 0.0
    %331 = vmatpush2.msra.mxu0 0.0
    %332 = vmatprep.mubr.f32.mxu0 0.0
    %333 = vmatmul.mubr.f32.gmra.mxu0 %v266
    %v334 = vpop.f32.mrf.mxu0
    %v335 = vadd.f32 %v262, %v334
    %v336 = vpop.f32.mrf.mxu0
    %337 = vdwg.mxu0
    %v339 = vrot.slane %v335, 2
    %v341 = vadd.f32 %v335, %v339
    %v342 = vxor.u32 %v341, 2147483648
    %v343 = vmul.f32 %v342, 1.442695
    %v344 = vpow.pop %v343
    %v345 = vadd.f32 %v344, 1.0
    %v346 = vrcp.pop %v345
    %v347 = vmul.f32 1.0, %v346
    %v348 = vlaneseq
    %v349 = vshrl.u32 %v348, 7
    %v350 = vsub.s32 0, %v349
    %v351 = vrot.slane %v347, %v350
    %353 = vbcast.lane.b32.xlu0 %v351, 256
    %v354 = vpop.permute.xlu0 %353
    %s356 = sor.u32 256, 8
    %357 = vbcast.lane.b32.xlu0 %v351, %s356
    %v358 = vpop.permute.xlu0 %357
    %v359 = vlaneseq
    %v360 = vshrl.u32 %v359, 7
    %v361 = vsub.s32 1, %v360
    %v362 = vrot.slane %v347, %v361
    %364 = vbcast.lane.b32.xlu0 %v362, 256
    %v365 = vpop.permute.xlu0 %364
    %s367 = sor.u32 256, 8
    %368 = vbcast.lane.b32.xlu0 %v362, %s367
    %v369 = vpop.permute.xlu0 %368
    %v370 = vmul.f32 %v91, %v354
    %v371 = vmul.f32 %v92, %v358
    %v372 = vmul.f32 %v93, %v365
    %v373 = vmul.f32 %v94, %v369
    %v374 = vadd.f32 %v370, %v371
    %v375 = vrot.slane %v374, 4
    %v376 = vadd.f32 %v374, %v375
    %v377 = vrot.slane %v376, 2
    %v378 = vadd.f32 %v376, %v377
    %v379 = vrot.slane %v378, 1
    %v380 = vadd.f32 %v378, %v379
    %v381 = vadd.f32 %v372, %v373
    %v382 = vrot.slane %v381, 4
    %v383 = vadd.f32 %v381, %v382
    %v384 = vrot.slane %v383, 2
    %v385 = vadd.f32 %v383, %v384
    %v386 = vrot.slane %v385, 1
    %v387 = vadd.f32 %v385, %v386
    %v388 = vrcp.pop 16.0
    %v389 = vmul.f32 %v380, %v388
    %v390 = vmul.f32 %v387, %v388
    %v391 = vmax.f32 %v370, %v371
    %v392 = vrot.slane %v391, 4
    %v393 = vmax.f32 %v391, %v392
    %v394 = vrot.slane %v393, 2
    %v395 = vmax.f32 %v393, %v394
    %v396 = vrot.slane %v395, 1
    %v397 = vmax.f32 %v395, %v396
    %v398 = vmax.f32 %v372, %v373
    %v399 = vrot.slane %v398, 4
    %v400 = vmax.f32 %v398, %v399
    %v401 = vrot.slane %v400, 2
    %v402 = vmax.f32 %v400, %v401
    %v403 = vrot.slane %v402, 1
    %v404 = vmax.f32 %v402, %v403
    %v407 = vsel %vm142, %v390, %v389
    %v411 = vsel %vm142, %v404, %v397
    %v413 = vld [vmem:[#allocation7] sm:$0xff]
    %v414 = vld [vmem:[#allocation7 + $0x8] sm:$0xff]
    %v415 = vld [vmem:[#allocation7 + $0x10] sm:$0xff]
    %v416 = vld [vmem:[#allocation7 + $0x18] sm:$0xff]
    %v417 = vld [vmem:[#allocation7 + $0x20] sm:$0xff]
    %v418 = vld [vmem:[#allocation7 + $0x28] sm:$0xff]
    %v419 = vld [vmem:[#allocation7 + $0x30] sm:$0xff]
    %v420 = vld [vmem:[#allocation7 + $0x38] sm:$0xff]
    %v421 = vld [vmem:[#allocation7 + $0x40] sm:$0xff]
    %v422 = vld [vmem:[#allocation7 + $0x48] sm:$0xff]
    %v423 = vld [vmem:[#allocation7 + $0x50] sm:$0xff]
    %v424 = vld [vmem:[#allocation7 + $0x58] sm:$0xff]
    %v425 = vld [vmem:[#allocation7 + $0x60] sm:$0xff]
    %v426 = vld [vmem:[#allocation7 + $0x68] sm:$0xff]
    %v427 = vld [vmem:[#allocation7 + $0x70] sm:$0xff]
    %v428 = vld [vmem:[#allocation7 + $0x78] sm:$0xff]
    %v429 = vld [vmem:[#allocation7 + $0x80] sm:$0xff]
    %v430 = vld [vmem:[#allocation7 + $0x88] sm:$0xff]
    %v431 = vld [vmem:[#allocation7 + $0x90] sm:$0xff]
    %v432 = vld [vmem:[#allocation7 + $0x98] sm:$0xff]
    %v433 = vld [vmem:[#allocation7 + $0xa0] sm:$0xff]
    %v434 = vld [vmem:[#allocation7 + $0xa8] sm:$0xff]
    %v435 = vld [vmem:[#allocation7 + $0xb0] sm:$0xff]
    %v436 = vld [vmem:[#allocation7 + $0xb8] sm:$0xff]
    %v437 = vld [vmem:[#allocation7 + $0xc0] sm:$0xff]
    %v438 = vld [vmem:[#allocation7 + $0xc8] sm:$0xff]
    %v439 = vld [vmem:[#allocation7 + $0xd0] sm:$0xff]
    %v440 = vld [vmem:[#allocation7 + $0xd8] sm:$0xff]
    %v441 = vld [vmem:[#allocation7 + $0xe0] sm:$0xff]
    %v442 = vld [vmem:[#allocation7 + $0xe8] sm:$0xff]
    %v443 = vld [vmem:[#allocation7 + $0xf0] sm:$0xff]
    %v444 = vld [vmem:[#allocation7 + $0xf8] sm:$0xff]
    %v445 = vld [vmem:[%s7] sm:$0x1]
    %v447 = vlaneseq
    %v448 = vshrl.u32 %v447, 7
    %v449 = vsub.s32 0, %v448
    %v450 = vrot.slane %v445, %v449
    %452 = vmatprep.subr.mxu0 0.0
    %453 = vmatpush1.msra.mxu0 %v428
    %454 = vmatprep.subr.mxu0 0.0
    %455 = vmatpush1.msra.mxu0 %v427
    %456 = vmatprep.subr.mxu0 0.0
    %457 = vmatpush1.msra.mxu0 %v426
    %458 = vmatprep.subr.mxu0 0.0
    %459 = vmatpush1.msra.mxu0 %v425
    %460 = vmatprep.subr.mxu0 0.0
    %461 = vmatpush1.msra.mxu0 %v424
    %462 = vmatprep.subr.mxu0 0.0
    %463 = vmatpush1.msra.mxu0 %v423
    %464 = vmatprep.subr.mxu0 0.0
    %465 = vmatpush1.msra.mxu0 %v422
    %466 = vmatprep.subr.mxu0 0.0
    %467 = vmatpush1.msra.mxu0 %v421
    %468 = vmatprep.subr.mxu0 0.0
    %469 = vmatpush1.msra.mxu0 %v420
    %470 = vmatprep.subr.mxu0 0.0
    %471 = vmatpush1.msra.mxu0 %v419
    %472 = vmatprep.subr.mxu0 0.0
    %473 = vmatpush1.msra.mxu0 %v418
    %474 = vmatprep.subr.mxu0 0.0
    %475 = vmatpush1.msra.mxu0 %v417
    %476 = vmatprep.subr.mxu0 0.0
    %477 = vmatpush1.msra.mxu0 %v416
    %478 = vmatprep.subr.mxu0 0.0
    %479 = vmatpush1.msra.mxu0 %v415
    %480 = vmatprep.subr.mxu0 0.0
    %481 = vmatpush1.msra.mxu0 %v414
    %482 = vmatprep.subr.mxu0 0.0
    %483 = vmatpush1.msra.mxu0 %v413
    %484 = vmatprep.subr.mxu0 0.0
    %485 = vmatpush2.msra.mxu0 %v444
    %486 = vmatprep.subr.mxu0 0.0
    %487 = vmatpush2.msra.mxu0 %v443
    %488 = vmatprep.subr.mxu0 0.0
    %489 = vmatpush2.msra.mxu0 %v442
    %490 = vmatprep.subr.mxu0 0.0
    %491 = vmatpush2.msra.mxu0 %v441
    %492 = vmatprep.subr.mxu0 0.0
    %493 = vmatpush2.msra.mxu0 %v440
    %494 = vmatprep.subr.mxu0 0.0
    %495 = vmatpush2.msra.mxu0 %v439
    %496 = vmatprep.subr.mxu0 0.0
    %497 = vmatpush2.msra.mxu0 %v438
    %498 = vmatprep.subr.mxu0 0.0
    %499 = vmatpush2.msra.mxu0 %v437
    %500 = vmatprep.subr.mxu0 0.0
    %501 = vmatpush2.msra.mxu0 %v436
    %502 = vmatprep.subr.mxu0 0.0
    %503 = vmatpush2.msra.mxu0 %v435
    %504 = vmatprep.subr.mxu0 0.0
    %505 = vmatpush2.msra.mxu0 %v434
    %506 = vmatprep.subr.mxu0 0.0
    %507 = vmatpush2.msra.mxu0 %v433
    %508 = vmatprep.subr.mxu0 0.0
    %509 = vmatpush2.msra.mxu0 %v432
    %510 = vmatprep.subr.mxu0 0.0
    %511 = vmatpush2.msra.mxu0 %v431
    %512 = vmatprep.subr.mxu0 0.0
    %513 = vmatpush2.msra.mxu0 %v430
    %514 = vmatprep.subr.mxu0 0.0
    %515 = vmatpush2.msra.mxu0 %v429
    %516 = vmatprep.mubr.f32.mxu0 %v411
    %517 = vmatmul.mubr.f32.gmra.mxu0 %v407
    %v518 = vpop.f32.mrf.mxu0
    %v519 = vadd.f32 %v450, %v518
    %v520 = vpop.f32.mrf.mxu0
    %521 = vdwg.mxu0
    %v522 = vxor.u32 %v519, 2147483648
    %v523 = vmul.f32 %v522, 1.442695
    %v524 = vpow.pop %v523
    %v525 = vadd.f32 %v524, 1.0
    %v526 = vrcp.pop %v525
    %v527 = vmul.f32 1.0, %v526
    %v530 = vunpack.c.l.s4 1966171168
    %v531 = vunpack.c.0.s8 %v530
    %v532 = vlaneseq
    %v533 = vshrl.u32 %v532, 7
    %v534 = vsub.s32 %v531, %v533
    %v535 = vrot.slane %v527, %v534
    %v536 = vcombine.high %v535, %v535
    %v538 = vunpack.c.l.s4 1966171168
    %v539 = vunpack.c.0.s8 %v538
    %v540 = vlaneseq
    %v541 = vshrl.u32 %v540, 7
    %v542 = vsub.s32 %v539, %v541
    %v543 = vrot.slane %v535, %v542
    %v545 = vunpack.c.l.s4 1966171168
    %v546 = vunpack.c.0.s8 %v545
    %v547 = vlaneseq
    %v548 = vshrl.u32 %v547, 7
    %v549 = vsub.s32 %v546, %v548
    %v550 = vrot.slane %v536, %v549
    %v551 = vlaneseq
    %v552 = vshrl.u32 %v551, 7
    %v553 = vsub.s32 0, %v552
    %v554 = vrot.slane %v543, %v553
    %v555 = vlaneseq
    %v556 = vshrl.u32 %v555, 7
    %v557 = vsub.s32 0, %v556
    %v558 = vrot.slane %v550, %v557
    %v561 = vmul.f32 %v370, %v554
    %v562 = vmul.f32 %v371, %v554
    %v563 = vmul.f32 %v372, %v558
    %v564 = vmul.f32 %v373, %v558
    %v569 = vcombine.high %v561, %v561
    %v571 = vunpack.c.l.s4 1966171168
    %v572 = vunpack.c.0.s8 %v571
    %v573 = vlaneseq
    %v574 = vshrl.u32 %v573, 7
    %v575 = vsub.s32 %v572, %v574
    %v576 = vrot.slane %v561, %v575
    %v578 = vunpack.c.l.s4 1966171168
    %v579 = vunpack.c.0.s8 %v578
    %v580 = vlaneseq
    %v581 = vshrl.u32 %v580, 7
    %v582 = vsub.s32 %v579, %v581
    %v583 = vrot.slane %v569, %v582
    %v584 = vcombine.high %v576, %v576
    %v585 = vcombine.high %v583, %v583
    %v587 = vunpack.c.l.s4 1966171168
    %v588 = vunpack.c.0.s8 %v587
    %v589 = vlaneseq
    %v590 = vshrl.u32 %v589, 7
    %v591 = vsub.s32 %v588, %v590
    %v592 = vrot.slane %v576, %v591
    %v594 = vunpack.c.l.s4 1966171168
    %v595 = vunpack.c.0.s8 %v594
    %v596 = vlaneseq
    %v597 = vshrl.u32 %v596, 7
    %v598 = vsub.s32 %v595, %v597
    %v599 = vrot.slane %v583, %v598
    %v601 = vunpack.c.l.s4 1966171168
    %v602 = vunpack.c.0.s8 %v601
    %v603 = vlaneseq
    %v604 = vshrl.u32 %v603, 7
    %v605 = vsub.s32 %v602, %v604
    %v606 = vrot.slane %v584, %v605
    %v608 = vunpack.c.l.s4 1966171168
    %v609 = vunpack.c.0.s8 %v608
    %v610 = vlaneseq
    %v611 = vshrl.u32 %v610, 7
    %v612 = vsub.s32 %v609, %v611
    %v613 = vrot.slane %v585, %v612
    %v614 = vcombine.high %v592, %v592
    %v615 = vcombine.high %v599, %v599
    %v616 = vcombine.high %v606, %v606
    %v617 = vcombine.high %v613, %v613
    %v618 = vcombine.high %v562, %v562
    %v620 = vunpack.c.l.s4 1966171168
    %v621 = vunpack.c.0.s8 %v620
    %v622 = vlaneseq
    %v623 = vshrl.u32 %v622, 7
    %v624 = vsub.s32 %v621, %v623
    %v625 = vrot.slane %v562, %v624
    %v627 = vunpack.c.l.s4 1966171168
    %v628 = vunpack.c.0.s8 %v627
    %v629 = vlaneseq
    %v630 = vshrl.u32 %v629, 7
    %v631 = vsub.s32 %v628, %v630
    %v632 = vrot.slane %v618, %v631
    %v633 = vcombine.high %v625, %v625
    %v634 = vcombine.high %v632, %v632
    %v636 = vunpack.c.l.s4 1966171168
    %v637 = vunpack.c.0.s8 %v636
    %v638 = vlaneseq
    %v639 = vshrl.u32 %v638, 7
    %v640 = vsub.s32 %v637, %v639
    %v641 = vrot.slane %v625, %v640
    %v643 = vunpack.c.l.s4 1966171168
    %v644 = vunpack.c.0.s8 %v643
    %v645 = vlaneseq
    %v646 = vshrl.u32 %v645, 7
    %v647 = vsub.s32 %v644, %v646
    %v648 = vrot.slane %v632, %v647
    %v650 = vunpack.c.l.s4 1966171168
    %v651 = vunpack.c.0.s8 %v650
    %v652 = vlaneseq
    %v653 = vshrl.u32 %v652, 7
    %v654 = vsub.s32 %v651, %v653
    %v655 = vrot.slane %v633, %v654
    %v657 = vunpack.c.l.s4 1966171168
    %v658 = vunpack.c.0.s8 %v657
    %v659 = vlaneseq
    %v660 = vshrl.u32 %v659, 7
    %v661 = vsub.s32 %v658, %v660
    %v662 = vrot.slane %v634, %v661
    %v663 = vcombine.high %v641, %v641
    %v664 = vcombine.high %v648, %v648
    %v665 = vcombine.high %v655, %v655
    %v666 = vcombine.high %v563, %v563
    %v668 = vunpack.c.l.s4 1966171168
    %v669 = vunpack.c.0.s8 %v668
    %v670 = vlaneseq
    %v671 = vshrl.u32 %v670, 7
    %v672 = vsub.s32 %v669, %v671
    %v673 = vrot.slane %v563, %v672
    %v675 = vunpack.c.l.s4 1966171168
    %v676 = vunpack.c.0.s8 %v675
    %v677 = vlaneseq
    %v678 = vshrl.u32 %v677, 7
    %v679 = vsub.s32 %v676, %v678
    %v680 = vrot.slane %v666, %v679
    %v681 = vcombine.high %v673, %v673
    %v682 = vcombine.high %v680, %v680
    %v684 = vunpack.c.l.s4 1966171168
    %v685 = vunpack.c.0.s8 %v684
    %v686 = vlaneseq
    %v687 = vshrl.u32 %v686, 7
    %v688 = vsub.s32 %v685, %v687
    %v689 = vrot.slane %v673, %v688
    %v691 = vunpack.c.l.s4 1966171168
    %v692 = vunpack.c.0.s8 %v691
    %v693 = vlaneseq
    %v694 = vshrl.u32 %v693, 7
    %v695 = vsub.s32 %v692, %v694
    %v696 = vrot.slane %v680, %v695
    %v698 = vunpack.c.l.s4 1966171168
    %v699 = vunpack.c.0.s8 %v698
    %v700 = vlaneseq
    %v701 = vshrl.u32 %v700, 7
    %v702 = vsub.s32 %v699, %v701
    %v703 = vrot.slane %v681, %v702
    %v705 = vunpack.c.l.s4 1966171168
    %v706 = vunpack.c.0.s8 %v705
    %v707 = vlaneseq
    %v708 = vshrl.u32 %v707, 7
    %v709 = vsub.s32 %v706, %v708
    %v710 = vrot.slane %v682, %v709
    %v711 = vcombine.high %v689, %v689
    %v712 = vcombine.high %v696, %v696
    %v713 = vcombine.high %v703, %v703
    %v714 = vcombine.high %v710, %v710
    %v715 = vcombine.high %v564, %v564
    %v717 = vunpack.c.l.s4 1966171168
    %v718 = vunpack.c.0.s8 %v717
    %v719 = vlaneseq
    %v720 = vshrl.u32 %v719, 7
    %v721 = vsub.s32 %v718, %v720
    %v722 = vrot.slane %v564, %v721
    %v724 = vunpack.c.l.s4 1966171168
    %v725 = vunpack.c.0.s8 %v724
    %v726 = vlaneseq
    %v727 = vshrl.u32 %v726, 7
    %v728 = vsub.s32 %v725, %v727
    %v729 = vrot.slane %v715, %v728
    %v730 = vcombine.high %v722, %v722
    %v731 = vcombine.high %v729, %v729
    %v733 = vunpack.c.l.s4 1966171168
    %v734 = vunpack.c.0.s8 %v733
    %v735 = vlaneseq
    %v736 = vshrl.u32 %v735, 7
    %v737 = vsub.s32 %v734, %v736
    %v738 = vrot.slane %v722, %v737
    %v740 = vunpack.c.l.s4 1966171168
    %v741 = vunpack.c.0.s8 %v740
    %v742 = vlaneseq
    %v743 = vshrl.u32 %v742, 7
    %v744 = vsub.s32 %v741, %v743
    %v745 = vrot.slane %v729, %v744
    %v747 = vunpack.c.l.s4 1966171168
    %v748 = vunpack.c.0.s8 %v747
    %v749 = vlaneseq
    %v750 = vshrl.u32 %v749, 7
    %v751 = vsub.s32 %v748, %v750
    %v752 = vrot.slane %v730, %v751
    %v754 = vunpack.c.l.s4 1966171168
    %v755 = vunpack.c.0.s8 %v754
    %v756 = vlaneseq
    %v757 = vshrl.u32 %v756, 7
    %v758 = vsub.s32 %v755, %v757
    %v759 = vrot.slane %v731, %v758
    %v760 = vcombine.high %v738, %v738
    %v761 = vcombine.high %v745, %v745
    %v762 = vcombine.high %v752, %v752
    %v763 = vld [vmem:[#allocation5] sm:$0xff]
    %v764 = vld [vmem:[#allocation5 + $0x8] sm:$0xff]
    %v765 = vld [vmem:[#allocation5 + $0x10] sm:$0xff]
    %v766 = vld [vmem:[#allocation5 + $0x18] sm:$0x3f]
    %v767 = vcombine.low %v592, %v606
    %v768 = vcombine.low %v614, %v616
    %v769 = vcombine.low %v599, %v613
    %v770 = vcombine.low %v615, %v617
    %v772 = vunpack.c.l.s4 1966171168
    %v773 = vunpack.c.0.s8 %v772
    %v774 = vlaneseq
    %v775 = vshrl.u32 %v774, 7
    %v776 = vsub.s32 %v773, %v775
    %v777 = vrot.slane %v767, %v776
    %v779 = vunpack.c.l.s4 1966171168
    %v780 = vunpack.c.0.s8 %v779
    %v781 = vlaneseq
    %v782 = vshrl.u32 %v781, 7
    %v783 = vsub.s32 %v780, %v782
    %v784 = vrot.slane %v768, %v783
    %v786 = vunpack.c.l.s4 1966171168
    %v787 = vunpack.c.0.s8 %v786
    %v788 = vlaneseq
    %v789 = vshrl.u32 %v788, 7
    %v790 = vsub.s32 %v787, %v789
    %v791 = vrot.slane %v769, %v790
    %v793 = vunpack.c.l.s4 1966171168
    %v794 = vunpack.c.0.s8 %v793
    %v795 = vlaneseq
    %v796 = vshrl.u32 %v795, 7
    %v797 = vsub.s32 %v794, %v796
    %v798 = vrot.slane %v770, %v797
    %v799 = vcombine.low %v777, %v784
    %v800 = vcombine.low %v791, %v798
    %v802 = vunpack.c.l.s4 1966171168
    %v803 = vunpack.c.0.s8 %v802
    %v804 = vlaneseq
    %v805 = vshrl.u32 %v804, 7
    %v806 = vsub.s32 %v803, %v805
    %v807 = vrot.slane %v799, %v806
    %v809 = vunpack.c.l.s4 1966171168
    %v810 = vunpack.c.0.s8 %v809
    %v811 = vlaneseq
    %v812 = vshrl.u32 %v811, 7
    %v813 = vsub.s32 %v810, %v812
    %v814 = vrot.slane %v800, %v813
    %v815 = vcombine.low %v807, %v814
    %v816 = vcombine.low %v641, %v655
    %v817 = vcombine.low %v663, %v665
    %v818 = vcombine.low %v648, %v662
    %v819 = vcombine.low %v664, %v689
    %v821 = vunpack.c.l.s4 1966171168
    %v822 = vunpack.c.0.s8 %v821
    %v823 = vlaneseq
    %v824 = vshrl.u32 %v823, 7
    %v825 = vsub.s32 %v822, %v824
    %v826 = vrot.slane %v816, %v825
    %v828 = vunpack.c.l.s4 1966171168
    %v829 = vunpack.c.0.s8 %v828
    %v830 = vlaneseq
    %v831 = vshrl.u32 %v830, 7
    %v832 = vsub.s32 %v829, %v831
    %v833 = vrot.slane %v817, %v832
    %v835 = vunpack.c.l.s4 1966171168
    %v836 = vunpack.c.0.s8 %v835
    %v837 = vlaneseq
    %v838 = vshrl.u32 %v837, 7
    %v839 = vsub.s32 %v836, %v838
    %v840 = vrot.slane %v818, %v839
    %v842 = vunpack.c.l.s4 1966171168
    %v843 = vunpack.c.0.s8 %v842
    %v844 = vlaneseq
    %v845 = vshrl.u32 %v844, 7
    %v846 = vsub.s32 %v843, %v845
    %v847 = vrot.slane %v819, %v846
    %v848 = vcombine.low %v826, %v833
    %v849 = vcombine.low %v840, %v847
    %v851 = vunpack.c.l.s4 1966171168
    %v852 = vunpack.c.0.s8 %v851
    %v853 = vlaneseq
    %v854 = vshrl.u32 %v853, 7
    %v855 = vsub.s32 %v852, %v854
    %v856 = vrot.slane %v848, %v855
    %v858 = vunpack.c.l.s4 1966171168
    %v859 = vunpack.c.0.s8 %v858
    %v860 = vlaneseq
    %v861 = vshrl.u32 %v860, 7
    %v862 = vsub.s32 %v859, %v861
    %v863 = vrot.slane %v849, %v862
    %v864 = vcombine.low %v856, %v863
    %v865 = vcombine.low %v703, %v711
    %v866 = vcombine.low %v713, %v696
    %v867 = vcombine.low %v710, %v712
    %v868 = vcombine.low %v714, %v738
    %v870 = vunpack.c.l.s4 1966171168
    %v871 = vunpack.c.0.s8 %v870
    %v872 = vlaneseq
    %v873 = vshrl.u32 %v872, 7
    %v874 = vsub.s32 %v871, %v873
    %v875 = vrot.slane %v865, %v874
    %v877 = vunpack.c.l.s4 1966171168
    %v878 = vunpack.c.0.s8 %v877
    %v879 = vlaneseq
    %v880 = vshrl.u32 %v879, 7
    %v881 = vsub.s32 %v878, %v880
    %v882 = vrot.slane %v866, %v881
    %v884 = vunpack.c.l.s4 1966171168
    %v885 = vunpack.c.0.s8 %v884
    %v886 = vlaneseq
    %v887 = vshrl.u32 %v886, 7
    %v888 = vsub.s32 %v885, %v887
    %v889 = vrot.slane %v867, %v888
    %v891 = vunpack.c.l.s4 1966171168
    %v892 = vunpack.c.0.s8 %v891
    %v893 = vlaneseq
    %v894 = vshrl.u32 %v893, 7
    %v895 = vsub.s32 %v892, %v894
    %v896 = vrot.slane %v868, %v895
    %v897 = vcombine.low %v875, %v882
    %v898 = vcombine.low %v889, %v896
    %v900 = vunpack.c.l.s4 1966171168
    %v901 = vunpack.c.0.s8 %v900
    %v902 = vlaneseq
    %v903 = vshrl.u32 %v902, 7
    %v904 = vsub.s32 %v901, %v903
    %v905 = vrot.slane %v897, %v904
    %v907 = vunpack.c.l.s4 1966171168
    %v908 = vunpack.c.0.s8 %v907
    %v909 = vlaneseq
    %v910 = vshrl.u32 %v909, 7
    %v911 = vsub.s32 %v908, %v910
    %v912 = vrot.slane %v898, %v911
    %v913 = vcombine.low %v905, %v912
    %v914 = vcombine.low %v752, %v760
    %v915 = vcombine.low %v762, %v745
    %v916 = vcombine.low %v759, %v761
    %v918 = vunpack.c.l.s4 1966171168
    %v919 = vunpack.c.0.s8 %v918
    %v920 = vlaneseq
    %v921 = vshrl.u32 %v920, 7
    %v922 = vsub.s32 %v919, %v921
    %v923 = vrot.slane %v914, %v922
    %v925 = vunpack.c.l.s4 1966171168
    %v926 = vunpack.c.0.s8 %v925
    %v927 = vlaneseq
    %v928 = vshrl.u32 %v927, 7
    %v929 = vsub.s32 %v926, %v928
    %v930 = vrot.slane %v915, %v929
    %v932 = vunpack.c.l.s4 1966171168
    %v933 = vunpack.c.0.s8 %v932
    %v934 = vlaneseq
    %v935 = vshrl.u32 %v934, 7
    %v936 = vsub.s32 %v933, %v935
    %v937 = vrot.slane %v916, %v936
    %v938 = vcombine.low %v923, %v930
    %v940 = vunpack.c.l.s4 1966171168
    %v941 = vunpack.c.0.s8 %v940
    %v942 = vlaneseq
    %v943 = vshrl.u32 %v942, 7
    %v944 = vsub.s32 %v941, %v943
    %v945 = vrot.slane %v938, %v944
    %v947 = vunpack.c.l.s4 1966171168
    %v948 = vunpack.c.0.s8 %v947
    %v949 = vlaneseq
    %v950 = vshrl.u32 %v949, 7
    %v951 = vsub.s32 %v948, %v950
    %v952 = vrot.slane %v937, %v951
    %v953 = vcombine.low %v945, %v952
    %v958 = vld [vmem:[#allocation8] sm:$0xff]
    %v959 = vld [vmem:[#allocation8 + $0x8] sm:$0xff]
    %v960 = vld [vmem:[#allocation8 + $0x10] sm:$0xff]
    %v961 = vld [vmem:[#allocation8 + $0x18] sm:$0xff]
    %v962 = vld [vmem:[#allocation8 + $0x20] sm:$0xff]
    %v963 = vld [vmem:[#allocation8 + $0x28] sm:$0xff]
    %v964 = vld [vmem:[#allocation8 + $0x30] sm:$0xff]
    %v965 = vld [vmem:[#allocation8 + $0x38] sm:$0xff]
    %v966 = vld [vmem:[#allocation8 + $0x40] sm:$0xff]
    %v967 = vld [vmem:[#allocation8 + $0x48] sm:$0xff]
    %v968 = vld [vmem:[#allocation8 + $0x50] sm:$0xff]
    %v969 = vld [vmem:[#allocation8 + $0x58] sm:$0xff]
    %v970 = vld [vmem:[#allocation8 + $0x60] sm:$0xff]
    %v971 = vld [vmem:[#allocation8 + $0x68] sm:$0xff]
    %v972 = vld [vmem:[#allocation8 + $0x70] sm:$0xff]
    %v973 = vld [vmem:[#allocation8 + $0x78] sm:$0xff]
    %v974 = vld [vmem:[#allocation8 + $0x80] sm:$0xff]
    %v975 = vld [vmem:[#allocation8 + $0x88] sm:$0xff]
    %v976 = vld [vmem:[#allocation8 + $0x90] sm:$0xff]
    %v977 = vld [vmem:[#allocation8 + $0x98] sm:$0xff]
    %v978 = vld [vmem:[#allocation8 + $0xa0] sm:$0xff]
    %v979 = vld [vmem:[#allocation8 + $0xa8] sm:$0xff]
    %v980 = vld [vmem:[#allocation8 + $0xb0] sm:$0xff]
    %v981 = vld [vmem:[#allocation8 + $0xb8] sm:$0xff]
    %v982 = vld [vmem:[%s9] sm:$0x1]
    %v984 = vlaneseq
    %v985 = vshrl.u32 %v984, 7
    %v986 = vsub.s32 0, %v985
    %v987 = vrot.slane %v982, %v986
    %vm989 = vcmask 523264
    %v991 = vsel %vm989, %v763, 0
    %v994 = vsel %vm989, %v764, 0
    %v997 = vsel %vm989, %v765, 0
    %v1000 = vsel %vm989, %v766, 0
    %1002 = vmatprep.subr.mxu0 0.0
    %1003 = vmatpush1.msra.mxu0 %v973
    %1004 = vmatprep.subr.mxu0 0.0
    %1005 = vmatpush1.msra.mxu0 %v972
    %1006 = vmatprep.subr.mxu0 0.0
    %1007 = vmatpush1.msra.mxu0 %v971
    %1008 = vmatprep.subr.mxu0 0.0
    %1009 = vmatpush1.msra.mxu0 %v970
    %1010 = vmatprep.subr.mxu0 0.0
    %1011 = vmatpush1.msra.mxu0 %v969
    %1012 = vmatprep.subr.mxu0 0.0
    %1013 = vmatpush1.msra.mxu0 %v968
    %1014 = vmatprep.subr.mxu0 0.0
    %1015 = vmatpush1.msra.mxu0 %v967
    %1016 = vmatprep.subr.mxu0 0.0
    %1017 = vmatpush1.msra.mxu0 %v966
    %1018 = vmatprep.subr.mxu0 0.0
    %1019 = vmatpush1.msra.mxu0 %v965
    %1020 = vmatprep.subr.mxu0 0.0
    %1021 = vmatpush1.msra.mxu0 %v964
    %1022 = vmatprep.subr.mxu0 0.0
    %1023 = vmatpush1.msra.mxu0 %v963
    %1024 = vmatprep.subr.mxu0 0.0
    %1025 = vmatpush1.msra.mxu0 %v962
    %1026 = vmatprep.subr.mxu0 0.0
    %1027 = vmatpush1.msra.mxu0 %v961
    %1028 = vmatprep.subr.mxu0 0.0
    %1029 = vmatpush1.msra.mxu0 %v960
    %1030 = vmatprep.subr.mxu0 0.0
    %1031 = vmatpush1.msra.mxu0 %v959
    %1032 = vmatprep.subr.mxu0 0.0
    %1033 = vmatpush1.msra.mxu0 %v958
    %1034 = vmatprep.subr.mxu0 0.0
    %1035 = vmatpush2.msra.mxu0 0.0
    %1036 = vmatprep.subr.mxu0 0.0
    %1037 = vmatpush2.msra.mxu0 0.0
    %1038 = vmatprep.subr.mxu0 0.0
    %1039 = vmatpush2.msra.mxu0 0.0
    %1040 = vmatprep.subr.mxu0 0.0
    %1041 = vmatpush2.msra.mxu0 0.0
    %1042 = vmatprep.subr.mxu0 0.0
    %1043 = vmatpush2.msra.mxu0 0.0
    %1044 = vmatprep.subr.mxu0 0.0
    %1045 = vmatpush2.msra.mxu0 0.0
    %1046 = vmatprep.subr.mxu0 0.0
    %1047 = vmatpush2.msra.mxu0 0.0
    %1048 = vmatprep.subr.mxu0 0.0
    %1049 = vmatpush2.msra.mxu0 0.0
    %1050 = vmatprep.subr.mxu0 0.0
    %1051 = vmatpush2.msra.mxu0 %v981
    %1052 = vmatprep.subr.mxu0 0.0
    %1053 = vmatpush2.msra.mxu0 %v980
    %1054 = vmatprep.subr.mxu0 0.0
    %1055 = vmatpush2.msra.mxu0 %v979
    %1056 = vmatprep.subr.mxu0 0.0
    %1057 = vmatpush2.msra.mxu0 %v978
    %1058 = vmatprep.subr.mxu0 0.0
    %1059 = vmatpush2.msra.mxu0 %v977
    %1060 = vmatprep.subr.mxu0 0.0
    %1061 = vmatpush2.msra.mxu0 %v976
    %1062 = vmatprep.subr.mxu0 0.0
    %1063 = vmatpush2.msra.mxu0 %v975
    %1064 = vmatprep.subr.mxu0 0.0
    %1065 = vmatpush2.msra.mxu0 %v974
    %1066 = vmatprep.mubr.f32.mxu0 %v991
    %1067 = vmatmul.mubr.f32.gmra.mxu0 %v815
    %v1068 = vpop.f32.mrf.mxu0
    %v1069 = vadd.f32 %v987, %v1068
    %v1070 = vpop.f32.mrf.mxu0
    %1071 = vmatprep.mubr.f32.mxu0 %v994
    %1072 = vmatmul.mubr.f32.gmra.mxu0 %v864
    %v1073 = vpop.f32.mrf.mxu0
    %v1074 = vadd.f32 %v987, %v1073
    %v1075 = vpop.f32.mrf.mxu0
    %1076 = vmatprep.mubr.f32.mxu0 %v997
    %1077 = vmatmul.mubr.f32.gmra.mxu0 %v913
    %v1078 = vpop.f32.mrf.mxu0
    %v1079 = vadd.f32 %v987, %v1078
    %v1080 = vpop.f32.mrf.mxu0
    %1081 = vmatprep.mubr.f32.mxu0 %v1000
    %1082 = vmatmul.mubr.f32.gmra.mxu0 %v953
    %v1083 = vpop.f32.mrf.mxu0
    %v1084 = vadd.f32 %v987, %v1083
    %v1085 = vpop.f32.mrf.mxu0
    %1086 = vdwg.mxu0
    %1087 = vst [vmem:[#allocation10] sm:$0xff] %v1069
    %1088 = vst [vmem:[#allocation10 + $0x8] sm:$0xff] %v1074
    %1089 = vst [vmem:[#allocation10 + $0x10] sm:$0xff] %v1079
    %1090 = vst [vmem:[#allocation10 + $0x18] sm:$0x3f] %v1084
    // Predicated region
    $region58: #{tpu_custom_call.1} parent=1 // pred_check
      _
    $region59: #{tpu_custom_call.1} parent=1 // pred_check_branch
      %1092 = sbr.rel (0) target = $region61
    $region60: #{tpu_custom_call.1} parent=1 // pred_region
      %s1094 = ssub.s32 512, 512
      %1095 = vsyncadd [#allocation4], %s1094
      %s1096 = sshll.u32 [#allocation10], 4
      %s1097 = int_to_ptr.vmem [resolvable:$true] %s1096
      %1102 = dma.vmem_to_hbm [thread:$0]  %s1097, 512, %s10, [#allocation4], 128, 128, 8
    $region61: #{tpu_custom_call.1} parent=1 // pred_fallthru
      _
    // Predicated region
    $region62: #{tpu_custom_call.1} parent=1 // pred_check
      _
    $region63: #{tpu_custom_call.1} parent=1 // pred_check_branch
      %1104 = sbr.rel (0) target = $region65
    $region64: #{tpu_custom_call.1} parent=1 // pred_region
      %1105 = dma.done [#allocation4], 512
    $region65: #{tpu_custom_call.1} parent=1 // pred_fallthru
      _
    %1106 = vsyncpa [#allocation3], 1
    %1107 = vsyncpa [#allocation6], 1
    %1108 = vsyncpa [#allocation9], 1
    %1109 = vsyncpa [#allocation4], 1

</llo_original>
